<compile_context>
chip_gen: v7x
topology: tpu7x:2x2x1
jax: 0.10.0
libtpu: 0.0.40
codegen_flags: <defaults>
</compile_context>

<pallas_src>
import functools
import math

import jax
import jax.numpy as jnp
from jax import lax
from jax.experimental import pallas as pl
from jax.experimental.pallas import tpu as pltpu

_VMEM_LIMIT = 48 * 1024 * 1024           # safe on v5e/v6e (128 MiB) and v7x (64 MiB)
_FLASH_VMEM_BUDGET = 40 * 1024 * 1024    # tile-selection budget (headroom below limit)


def _round_up(x, m):
    return ((x + m - 1) // m) * m


# ----------------------------------------------------------------------------
# Kernel 1: tiled linear  y = x @ w   (bf16 operands, f32 accumulation)
# ----------------------------------------------------------------------------
def linear_kernel(x_ref, w_ref, o_ref, acc_ref):
    k = pl.program_id(2)

    @pl.when(k == 0)
    def _():
        acc_ref[...] = jnp.zeros_like(acc_ref)

    acc_ref[...] += jnp.dot(x_ref[...], w_ref[...],
                            preferred_element_type=jnp.float32)

    @pl.when(k == pl.num_programs(2) - 1)
    def _():
        o_ref[...] = acc_ref[...].astype(o_ref.dtype)


def linear(x2d, w, *, tm_cap=512, tn_cap=1024, tk_cap=512,
           out_dtype=jnp.bfloat16):
    """y = x2d @ w with zero-padding of ragged dims (pads contribute 0)."""
    R, Cin = x2d.shape
    Cin_w, Cout = w.shape
    assert Cin == Cin_w

    tm = min(tm_cap, _round_up(R, 8))
    tn = min(tn_cap, _round_up(Cout, 128))
    tk = min(tk_cap, _round_up(Cin, 128))
    Rp = _round_up(R, tm)
    Kp = _round_up(Cin, tk)
    Cp = _round_up(Cout, tn)

    if (Rp, Kp) != (R, Cin):
        x2d = jnp.pad(x2d, ((0, Rp - R), (0, Kp - Cin)))
    if (Kp, Cp) != (Cin, Cout):
        w = jnp.pad(w, ((0, Kp - Cin), (0, Cp - Cout)))

    grid = (Rp // tm, Cp // tn, Kp // tk)
    out = pl.pallas_call(
        linear_kernel,
        out_shape=jax.ShapeDtypeStruct((Rp, Cp), out_dtype),
        grid=grid,
        in_specs=[
            pl.BlockSpec((tm, tk), lambda i, j, k: (i, k)),
            pl.BlockSpec((tk, tn), lambda i, j, k: (k, j)),
        ],
        out_specs=pl.BlockSpec((tm, tn), lambda i, j, k: (i, j)),
        scratch_shapes=[pltpu.VMEM((tm, tn), jnp.float32)],
        compiler_params=pltpu.CompilerParams(
            dimension_semantics=("parallel", "parallel", "arbitrary"),
            vmem_limit_bytes=_VMEM_LIMIT),
    )(x2d, w)
    if (Rp, Cp) != (R, Cout):
        out = out[:R, :Cout]
    return out


# ----------------------------------------------------------------------------
# Kernel 2: flash attention with fused output projection
#   grid = (B, num_q_blocks, num_heads, num_kv_blocks)
# ----------------------------------------------------------------------------
def flash_attn_proj_kernel(q_ref, k_ref, v_ref, wp_ref, b_ref, o_ref,
                           m_sc, l_sc, acc_sc, proj_sc,
                           *, kv_len, mask_kv, wp_resident):
    # q_ref: (1, tq, D) bf16 (1/sqrt(D) already folded into Wq)
    # k_ref/v_ref: (1, tk, D) bf16
    # wp_ref: (C, C) bf16 (resident) or (D, C) bf16 per-head slab
    # b_ref: (1, C) f32          o_ref: (1, tq, C)         scratch in f32
    h = pl.program_id(2)
    ki = pl.program_id(3)
    last_h = pl.num_programs(2) - 1
    last_k = pl.num_programs(3) - 1
    D = q_ref.shape[-1]
    tk = k_ref.shape[1]

    @pl.when(ki == 0)
    def _():
        m_sc[...] = jnp.full_like(m_sc, -jnp.inf)
        l_sc[...] = jnp.zeros_like(l_sc)
        acc_sc[...] = jnp.zeros_like(acc_sc)

    @pl.when((ki == 0) & (h == 0))
    def _():
        proj_sc[...] = jnp.zeros_like(proj_sc)

    q = q_ref[0]
    k = k_ref[0]
    v = v_ref[0]

    # q @ k^T without materializing a transpose (contract last dims on MXU).
    s = lax.dot_general(q, k, (((1,), (1,)), ((), ())),
                        preferred_element_type=jnp.float32)     # (tq, tk) f32

    if mask_kv:  # ragged M: mask zero-padded kv rows
        kv_idx = ki * tk + lax.broadcasted_iota(jnp.int32, s.shape, 1)
        s = jnp.where(kv_idx < kv_len, s, -1e30)

    m_prev = m_sc[...]
    m_new = jnp.maximum(m_prev, jnp.max(s, axis=-1, keepdims=True))
    alpha = jnp.exp(m_prev - m_new)
    # bf16 exp: p feeds a bf16 MXU matmul anyway; keeps the single EUP from
    # binding once the kernel is compute-bound (v6e/v7x).
    p = jnp.exp((s - m_new).astype(jnp.bfloat16))               # (tq, tk) bf16
    l_sc[...] = alpha * l_sc[...] + jnp.sum(p.astype(jnp.float32),
                                            axis=-1, keepdims=True)
    acc_sc[...] = alpha * acc_sc[...] + jnp.dot(
        p, v, preferred_element_type=jnp.float32)
    m_sc[...] = m_new

    # End of KV loop for this head: normalize and fold this head's output into
    # the fused output-projection accumulator.
    @pl.when(ki == last_k)
    def _():
        if wp_resident:
            wp_slab = wp_ref[pl.ds(pl.multiple_of(h * D, D), D), :]
        else:
            wp_slab = wp_ref[...]
        o_h = acc_sc[...] * pl.reciprocal(l_sc[...], approx=True)   # (tq, D)
        proj_sc[...] += jnp.dot(o_h.astype(wp_slab.dtype), wp_slab,
                                preferred_element_type=jnp.float32)

    # Last head, last KV block: add bias and emit the (tq, C) output tile.
    @pl.when((ki == last_k) & (h == last_h))
    def _():
        o_ref[0] = (proj_sc[...] + b_ref[...]).astype(o_ref.dtype)


def _flash_vmem_bytes(tq, tk, C, D, out_itemsize, wp_resident):
    wp = 2 * (C * C if wp_resident else D * C) * 2   # Wp (double-buffered, bf16)
    qb = 2 * tq * D * 2                              # q block x2 buffers
    kvb = 2 * 2 * tk * D * 2                         # k + v blocks x2 buffers
    ob = 2 * tq * C * out_itemsize                   # out block x2 buffers
    scr = tq * C * 4 + tq * D * 4 + 2 * tq * 4       # proj, acc, m, l
    return wp + qb + kvb + ob + scr


def _choose_flash_tiles(N, M, C, D, out_itemsize, wp_resident,
                        budget=_FLASH_VMEM_BUDGET):
    tq = min(512, _round_up(N, 8))
    tk = min(512, _round_up(M, 8))
    while tq > 8 and _flash_vmem_bytes(tq, tk, C, D, out_itemsize,
                                       wp_resident) > budget:
        tq = max(8, (tq // 2) // 8 * 8)
    while tk > 8 and _flash_vmem_bytes(tq, tk, C, D, out_itemsize,
                                       wp_resident) > budget:
        tk = max(8, (tk // 2) // 8 * 8)
    return tq, tk


# ----------------------------------------------------------------------------
# wrappers
# ----------------------------------------------------------------------------
def prepare_params(params, num_heads):
    """One-time weight prep: transpose to (C_in, C_out), cast to bf16, fold
    the 1/sqrt(head_dim) attention scale into Wq; build the fused [Wq|Wkv]."""
    dim = params["to_q_w"].shape[0]
    context_dim = params["to_kv_w"].shape[1]
    head_dim = dim // num_heads
    scale = 1.0 / math.sqrt(head_dim)
    wq = (params["to_q_w"].T * scale).astype(jnp.bfloat16)      # (C, C)
    wkv = params["to_kv_w"].T.astype(jnp.bfloat16)              # (Cc, 2C)
    w_qkv = (jnp.concatenate([wq, wkv], axis=1)                 # (C, 3C)
             if context_dim == dim else None)
    return {
        "wq": wq, "wkv": wkv, "w_qkv": w_qkv,
        "wp": params["proj_w"].T.astype(jnp.bfloat16),          # (C, C)
        "bp": params["proj_b"].reshape(1, dim).astype(jnp.float32),
    }


def _pad_rows(a, target):
    n = a.shape[1]
    return a if n == target else jnp.pad(a, ((0, 0), (0, target - n), (0, 0)))


def attention_forward(x, context, prep, num_heads):
    """Pallas implementation of Attention.forward (attn_drop=proj_drop=0)."""
    B, N, C = x.shape
    H = num_heads
    D = C // H
    assert C % H == 0
    # TODO(synk): support head_dim that is not a multiple of 128 by padding D.
    assert D % 128 == 0, "head_dim must be a multiple of 128"

    self_attn = context is None
    ctx = x if self_attn else context
    M, Cc = ctx.shape[1], ctx.shape[2]

    xb = x.astype(jnp.bfloat16).reshape(B * N, C)

    # --- projections (bf16 MXU, f32 accumulation) ---------------------------
    if self_attn and prep["w_qkv"] is not None:
        # Fused q/kv projection: x streamed from HBM once; wider N dim on MXU.
        qkv = linear(xb, prep["w_qkv"]).reshape(B, N, 3 * C)
        q_src, kv_src = qkv, qkv
        q_off, k_off, v_off = 0, H, 2 * H
    else:
        cb = ctx.astype(jnp.bfloat16).reshape(B * M, Cc)
        q_src = linear(xb, prep["wq"]).reshape(B, N, C)
        kv_src = linear(cb, prep["wkv"]).reshape(B, M, 2 * C)
        q_off, k_off, v_off = 0, 0, H

    out_itemsize = jnp.dtype(x.dtype).itemsize
    wp_resident = 2 * C * C * 2 <= _FLASH_VMEM_BUDGET // 2
    tq, tk = _choose_flash_tiles(N, M, C, D, out_itemsize, wp_resident)

    Np = _round_up(N, tq)
    Mp = _round_up(M, tk)
    # Keep >= 2 parallel grid units for megacore (v7x has 2 TensorCores).
    if B * (Np // tq) < 2 and Np > 8:
        tq = max(8, _round_up(pl.cdiv(Np, 2), 8))
        Np = _round_up(N, tq)

    if q_src is kv_src:
        padded = _pad_rows(q_src, max(Np, Mp))
        q_src = kv_src = padded
    else:
        q_src = _pad_rows(q_src, Np)
        kv_src = _pad_rows(kv_src, Mp)
    mask_kv = Mp != M

    grid = (B, Np // tq, H, Mp // tk)

    def _q_map(off):
        return lambda b, qi, h, ki: (b, qi, h + off)

    def _kv_map(off):
        return lambda b, qi, h, ki: (b, ki, h + off)

    if wp_resident:
        wp_spec = pl.BlockSpec((C, C), lambda b, qi, h, ki: (0, 0))
    else:
        wp_spec = pl.BlockSpec((D, C), lambda b, qi, h, ki: (h, 0))

    kernel = functools.partial(flash_attn_proj_kernel, kv_len=M,
                               mask_kv=mask_kv, wp_resident=wp_resident)

    out = pl.pallas_call(
        kernel,
        out_shape=jax.ShapeDtypeStruct((B, Np, C), x.dtype),
        grid=grid,
        in_specs=[
            pl.BlockSpec((1, tq, D), _q_map(q_off)),      # q (head h)
            pl.BlockSpec((1, tk, D), _kv_map(k_off)),     # k (head h)
            pl.BlockSpec((1, tk, D), _kv_map(v_off)),     # v (head h)
            wp_spec,                                      # Wp (resident or slab)
            pl.BlockSpec((1, C), lambda b, qi, h, ki: (0, 0)),   # proj bias
        ],
        out_specs=pl.BlockSpec((1, tq, C), lambda b, qi, h, ki: (b, qi, 0)),
        scratch_shapes=[
            pltpu.VMEM((tq, 1), jnp.float32),    # m (running max)
            pltpu.VMEM((tq, 1), jnp.float32),    # l (running sum)
            pltpu.VMEM((tq, D), jnp.float32),    # per-head attention accumulator
            pltpu.VMEM((tq, C), jnp.float32),    # fused output-projection accum
        ],
        compiler_params=pltpu.CompilerParams(
            dimension_semantics=("parallel", "parallel", "arbitrary", "arbitrary"),
            vmem_limit_bytes=_VMEM_LIMIT),
    )(q_src, kv_src, kv_src, prep["wp"], prep["bp"])

    if Np != N:
        out = out[:, :N, :]
    # TODO(synk): attn_drop / proj_drop are 0.0 (eval semantics); dropout not emitted.
    return out


# ----------------------------------------------------------------------------
# pure-JAX reference (f32) for verification
# ----------------------------------------------------------------------------
def reference_forward(x, context, params, num_heads):
    ctx = x if context is None else context
    B, N, C = x.shape
    M = ctx.shape[1]
    D = C // num_heads
    q = x @ params["to_q_w"].T
    kv = ctx @ params["to_kv_w"].T
    q = q.reshape(B, N, num_heads, D).transpose(0, 2, 1, 3)
    kv = kv.reshape(B, M, 2, num_heads, D).transpose(2, 0, 3, 1, 4)
    k, v = kv[0], kv[1]
    scale = 1.0 / math.sqrt(D)
    s = jnp.einsum("bhnd,bhmd->bhnm", q, k) * scale
    w = jax.nn.softmax(s, axis=-1)
    o = jnp.einsum("bhnm,bhmd->bhnd", w, v)
    o = o.transpose(0, 2, 1, 3).reshape(B, N, C)
    return o @ params["proj_w"].T + params["proj_b"]


def init_params(key, dim, context_dim):
    k1, k2, k3, k4 = jax.random.split(key, 4)
    s = 1.0 / math.sqrt(dim)
    return {
        "to_q_w": jax.random.uniform(k1, (dim, dim), jnp.float32, -s, s),
        "to_kv_w": jax.random.uniform(k2, (2 * dim, context_dim), jnp.float32, -s, s),
        "proj_w": jax.random.uniform(k3, (dim, dim), jnp.float32, -s, s),
        "proj_b": jax.random.uniform(k4, (dim,), jnp.float32, -s, s),
    }


if __name__ == "__main__":
    B, N, dim, num_heads = 2, 8, 256, 2  # head_dim = 128 (lane-aligned)
    key = jax.random.PRNGKey(0)
    kx, kp = jax.random.split(key)
    x = jax.random.normal(kx, (B, N, dim), dtype=jnp.float32)
    params = init_params(kp, dim, context_dim=dim)
    prep = prepare_params(params, num_heads)

    out = attention_forward(x, None, prep, num_heads)
    out = jax.block_until_ready(out)

    ref = reference_forward(x, None, params, num_heads)
    assert out.shape == (B, N, dim)
    max_err = float(jnp.max(jnp.abs(out - ref)))
    # bf16 MXU operands + bf16 exp + approx reciprocal vs f32 reference.
    assert jnp.allclose(out, ref, rtol=2e-2, atol=2e-2), f"mismatch: {max_err}"
    print("KERNEL_OK")
</pallas_src>

<mosaic_0001>
module attributes {stable_mosaic.version = 11 : i64} {
  func.func @linear_kernel(%arg0: i32, %arg1: i32, %arg2: i32, %arg3: memref<16x256xbf16, #tpu.memory_space<vmem>>, %arg4: memref<256x768xbf16, #tpu.memory_space<vmem>>, %arg5: memref<16x768xbf16, #tpu.memory_space<vmem>>, %arg6: memref<16x768xf32, #tpu.memory_space<vmem>>) attributes {dimension_semantics = [#tpu.dimension_semantics<parallel>, #tpu.dimension_semantics<parallel>, #tpu.dimension_semantics<arbitrary>], iteration_bounds = array<i64: 1, 1, 1>, scalar_prefetch = 0 : i64, scratch_operands = 1 : i64, tpu.core_type = #tpu.core_type<tc>, window_params = [{transform_indices = @transform_0, window_bounds = array<i64: 16, 256>}, {transform_indices = @transform_1, window_bounds = array<i64: 256, 768>}, {transform_indices = @transform_2, window_bounds = array<i64: 16, 768>}]} {
    %c0_i32 = arith.constant 0 : i32
    %0 = arith.cmpi eq, %arg2, %c0_i32 : i32
    %1 = arith.extui %0 : i1 to i32
    %c0_i32_0 = arith.constant 0 : i32
    %2 = arith.cmpi ne, %1, %c0_i32_0 : i32
    scf.if %2 {
      %cst_10 = arith.constant 0.000000e+00 : f32
      %12 = vector.broadcast %cst_10 : f32 to vector<16x768xf32>
      %c0_11 = arith.constant 0 : index
      %c0_12 = arith.constant 0 : index
      %13 = vector.load %arg6[%c0_11, %c0_12] : memref<16x768xf32, #tpu.memory_space<vmem>>, vector<16x768xf32>
      tpu.vector_store %arg6[%c0_11, %c0_12], %12 {strides = array<i32>} : memref<16x768xf32, #tpu.memory_space<vmem>>, vector<16x768xf32>,
    } else {
    }
    %c0 = arith.constant 0 : index
    %c0_1 = arith.constant 0 : index
    %3 = vector.load %arg6[%c0, %c0_1] : memref<16x768xf32, #tpu.memory_space<vmem>>, vector<16x768xf32>
    %c0_2 = arith.constant 0 : index
    %c0_3 = arith.constant 0 : index
    %4 = vector.load %arg3[%c0_2, %c0_3] : memref<16x256xbf16, #tpu.memory_space<vmem>>, vector<16x256xbf16>
    %c0_4 = arith.constant 0 : index
    %c0_5 = arith.constant 0 : index
    %5 = vector.load %arg4[%c0_4, %c0_5] : memref<256x768xbf16, #tpu.memory_space<vmem>>, vector<256x768xbf16>
    %cst = arith.constant dense<0.000000e+00> : vector<16x768xf32>
    %6 = tpu.matmul %4, %5, %cst {dimension_numbers = #tpu.dot_dimension_numbers<[1], [0], [0], [1], [0, 0, 1, 1], [], []>} : vector<16x256xbf16>, vector<256x768xbf16>, vector<16x768xf32> -> vector<16x768xf32>
    %7 = arith.addf %3, %6 : vector<16x768xf32>
    %c0_6 = arith.constant 0 : index
    %c0_7 = arith.constant 0 : index
    %8 = vector.load %arg6[%c0_6, %c0_7] : memref<16x768xf32, #tpu.memory_space<vmem>>, vector<16x768xf32>
    tpu.vector_store %arg6[%c0_6, %c0_7], %7 {strides = array<i32>} : memref<16x768xf32, #tpu.memory_space<vmem>>, vector<16x768xf32>,
    %c0_i32_8 = arith.constant 0 : i32
    %9 = arith.cmpi eq, %arg2, %c0_i32_8 : i32
    %10 = arith.extui %9 : i1 to i32
    %c0_i32_9 = arith.constant 0 : i32
    %11 = arith.cmpi ne, %10, %c0_i32_9 : i32
    scf.if %11 {
      %c0_10 = arith.constant 0 : index
      %c0_11 = arith.constant 0 : index
      %12 = vector.load %arg6[%c0_10, %c0_11] : memref<16x768xf32, #tpu.memory_space<vmem>>, vector<16x768xf32>
      %13 = arith.truncf %12 : vector<16x768xf32> to vector<16x768xbf16>
      %c0_12 = arith.constant 0 : index
      %c0_13 = arith.constant 0 : index
      %14 = vector.load %arg5[%c0_12, %c0_13] : memref<16x768xbf16, #tpu.memory_space<vmem>>, vector<16x768xbf16>
      tpu.vector_store %arg5[%c0_12, %c0_13], %13 {strides = array<i32>} : memref<16x768xbf16, #tpu.memory_space<vmem>>, vector<16x768xbf16>,
    } else {
    }
    return
  }
  func.func @transform_0(%arg0: i32, %arg1: i32, %arg2: i32) -> (i32, i32) {
    %c0_i32 = arith.constant 0 : i32
    return %arg0, %arg2 : i32, i32
  }
  func.func @transform_1(%arg0: i32, %arg1: i32, %arg2: i32) -> (i32, i32) {
    %c0_i32 = arith.constant 0 : i32
    return %arg2, %arg1 : i32, i32
  }
  func.func @transform_2(%arg0: i32, %arg1: i32, %arg2: i32) -> (i32, i32) {
    %c0_i32 = arith.constant 0 : i32
    return %arg0, %arg1 : i32, i32
  }
}

</mosaic_0001>

<llo_original>
// kernel: tpu_custom_call.1
$region0: #{tpu_custom_call.1}
  #allocation0 [shape = 'u32[]', space=smem, size = 0x4, offset = 0x4, fixed_abs, tag = 'smem constant byte address 0x4 - core index']
  #allocation1 [shape = 'u32[144,128]{1,0:T(1,128)}', space=vmem, size = 0x12000, scoped, tag = 'internal scratch']
  #allocation2 [shape = 'f32[16,768]{1,0:T(8,128)}', space=vmem, size = 0xc000, scoped, tag = 'scratch operand']
  %s0 = inlined_call_operand.hbm [shape: bf16[16,256], index: 0, kind: input, shape index: {}]
  %s1 = inlined_call_operand.hbm [shape: bf16[256,768], index: 1, kind: input, shape index: {}]
  %s2 = inlined_call_operand.hbm [shape: bf16[16,768], index: 2, kind: output, shape index: {}]
  %s3 = sld [smem:[#allocation0]]
  $region34: #{tpu_custom_call.1} parent=0
    _
  %s5 = ssub.s32 1, %s3
  %s6 = scalar_select 0, %s5, %s3
  $region1: #{tpu_custom_call.1} parent=0
    #allocation3 [shape = 'u8[8192]{0}', space=vmem, size = 0x2000, scoped, tag = 'input window, operand 0, single buffered']
    #allocation4 [shape = 's32[1]{0}', space=sflag, size = 0x4, scoped, tag = 'scoped memory for tpu_custom_call.1']
    #allocation5 [shape = 's32[1]{0}', space=sflag, size = 0x4, scoped, tag = 'scoped memory for tpu_custom_call.1']
    #allocation6 [shape = 'u8[393216]{0}', space=vmem, size = 0x60000, scoped, tag = 'input window, operand 1, single buffered']
    #allocation7 [shape = 's32[1]{0}', space=sflag, size = 0x4, scoped, tag = 'scoped memory for tpu_custom_call.1']
    #allocation8 [shape = 'u8[24576]{0}', space=vmem, size = 0x6000, scoped, tag = 'output window, operand 0, single buffered']
    %7 = vsyncpa [#allocation4], 0
    %8 = vsyncpa [#allocation7], 0
    %9 = vsyncpa [#allocation5], 0
    // Predicated region
    $region2: #{tpu_custom_call.1} parent=1 // pred_check
      _
    $region3: #{tpu_custom_call.1} parent=1 // pred_check_branch
      %11 = sbr.rel (0) target = $region5
    $region4: #{tpu_custom_call.1} parent=1 // pred_region
      %s13 = ssub.s32 256, 256
      %14 = vsyncadd [#allocation4], %s13
      %s15 = sshll.u32 [#allocation3], 4
      %s16 = int_to_ptr.vmem [resolvable:$true] %s15
      %21 = dma.hbm_to_vmem [thread:$0]  %s0, 256, %s16, [#allocation4], 128, 128, 8
    $region5: #{tpu_custom_call.1} parent=1 // pred_fallthru
      _
    // Predicated region
    $region6: #{tpu_custom_call.1} parent=1 // pred_check
      _
    $region7: #{tpu_custom_call.1} parent=1 // pred_check_branch
      %23 = sbr.rel (0) target = $region9
    $region8: #{tpu_custom_call.1} parent=1 // pred_region
      %s25 = ssub.s32 12288, 12288
      %26 = vsyncadd [#allocation7], %s25
      %s27 = sshll.u32 [#allocation6], 4
      %s28 = int_to_ptr.vmem [resolvable:$true] %s27
      %33 = dma.hbm_to_vmem [thread:$0]  %s1, 12288, %s28, [#allocation7], 384, 384, 24
    $region9: #{tpu_custom_call.1} parent=1 // pred_fallthru
      _
    // Predicated region
    $region10: #{tpu_custom_call.1} parent=1 // pred_check
      _
    $region11: #{tpu_custom_call.1} parent=1 // pred_check_branch
      %35 = sbr.rel (0) target = $region13
    $region12: #{tpu_custom_call.1} parent=1 // pred_region
      %36 = dma.done [#allocation4], 256
    $region13: #{tpu_custom_call.1} parent=1 // pred_fallthru
      _
    // Predicated region
    $region14: #{tpu_custom_call.1} parent=1 // pred_check
      _
    $region15: #{tpu_custom_call.1} parent=1 // pred_check_branch
      %38 = sbr.rel (0) target = $region17
    $region16: #{tpu_custom_call.1} parent=1 // pred_region
      %39 = dma.done [#allocation7], 12288
    $region17: #{tpu_custom_call.1} parent=1 // pred_fallthru
      _
    %p40 = scmp.eq.s32.totalorder 0, 0
    // Predicated region
    $region18: #{tpu_custom_call.1} parent=1 // pred_check
      %p41 = pneg %p40
    $region19: #{tpu_custom_call.1} parent=1 // pred_check_branch
      %43 = sbr.rel (%p41) target = $region21
    $region20: #{tpu_custom_call.1} parent=1 // pred_region
      %44 = vst [vmem:[#allocation2] sm:$0xff] 0.0
      %45 = vst [vmem:[#allocation2 + $0x8] sm:$0xff] 0.0
      %46 = vst [vmem:[#allocation2 + $0x10] sm:$0xff] 0.0
      %47 = vst [vmem:[#allocation2 + $0x18] sm:$0xff] 0.0
      %48 = vst [vmem:[#allocation2 + $0x20] sm:$0xff] 0.0
      %49 = vst [vmem:[#allocation2 + $0x28] sm:$0xff] 0.0
      %50 = vst [vmem:[#allocation2 + $0x30] sm:$0xff] 0.0
      %51 = vst [vmem:[#allocation2 + $0x38] sm:$0xff] 0.0
      %52 = vst [vmem:[#allocation2 + $0x40] sm:$0xff] 0.0
      %53 = vst [vmem:[#allocation2 + $0x48] sm:$0xff] 0.0
      %54 = vst [vmem:[#allocation2 + $0x50] sm:$0xff] 0.0
      %55 = vst [vmem:[#allocation2 + $0x58] sm:$0xff] 0.0
    $region21: #{tpu_custom_call.1} parent=1 // pred_fallthru
      _
    %v56 = vld [vmem:[#allocation2] sm:$0xff]
    %v57 = vld [vmem:[#allocation2 + $0x8] sm:$0xff]
    %v58 = vld [vmem:[#allocation2 + $0x10] sm:$0xff]
    %v59 = vld [vmem:[#allocation2 + $0x18] sm:$0xff]
    %v60 = vld [vmem:[#allocation2 + $0x20] sm:$0xff]
    %v61 = vld [vmem:[#allocation2 + $0x28] sm:$0xff]
    %v62 = vld [vmem:[#allocation2 + $0x30] sm:$0xff]
    %v63 = vld [vmem:[#allocation2 + $0x38] sm:$0xff]
    %v64 = vld [vmem:[#allocation2 + $0x40] sm:$0xff]
    %v65 = vld [vmem:[#allocation2 + $0x48] sm:$0xff]
    %v66 = vld [vmem:[#allocation2 + $0x50] sm:$0xff]
    %v67 = vld [vmem:[#allocation2 + $0x58] sm:$0xff]
    %v68 = vld [vmem:[#allocation3] sm:$0xff]
    %v69 = vld [vmem:[#allocation3 + $0x8] sm:$0xff]
    %v70 = vld [vmem:[#allocation6] sm:$0xff]
    %v71 = vld [vmem:[#allocation6 + $0x8] sm:$0xff]
    %v72 = vld [vmem:[#allocation6 + $0x10] sm:$0xff]
    %v73 = vld [vmem:[#allocation6 + $0x18] sm:$0xff]
    %v74 = vld [vmem:[#allocation6 + $0x20] sm:$0xff]
    %v75 = vld [vmem:[#allocation6 + $0x28] sm:$0xff]
    %v76 = vld [vmem:[#allocation6 + $0x30] sm:$0xff]
    %v77 = vld [vmem:[#allocation6 + $0x38] sm:$0xff]
    %v78 = vld [vmem:[#allocation6 + $0x40] sm:$0xff]
    %v79 = vld [vmem:[#allocation6 + $0x48] sm:$0xff]
    %v80 = vld [vmem:[#allocation6 + $0x50] sm:$0xff]
    %v81 = vld [vmem:[#allocation6 + $0x58] sm:$0xff]
    %v82 = vld [vmem:[#allocation6 + $0x60] sm:$0xff]
    %v83 = vld [vmem:[#allocation6 + $0x68] sm:$0xff]
    %v84 = vld [vmem:[#allocation6 + $0x70] sm:$0xff]
    %v85 = vld [vmem:[#allocation6 + $0x78] sm:$0xff]
    %v86 = vld [vmem:[#allocation6 + $0x80] sm:$0xff]
    %v87 = vld [vmem:[#allocation6 + $0x88] sm:$0xff]
    %v88 = vld [vmem:[#allocation6 + $0x90] sm:$0xff]
    %v89 = vld [vmem:[#allocation6 + $0x98] sm:$0xff]
    %v90 = vld [vmem:[#allocation6 + $0xa0] sm:$0xff]
    %v91 = vld [vmem:[#allocation6 + $0xa8] sm:$0xff]
    %v92 = vld [vmem:[#allocation6 + $0xb0] sm:$0xff]
    %v93 = vld [vmem:[#allocation6 + $0xb8] sm:$0xff]
    %v94 = vld [vmem:[#allocation6 + $0xc0] sm:$0xff]
    %v95 = vld [vmem:[#allocation6 + $0xc8] sm:$0xff]
    %v96 = vld [vmem:[#allocation6 + $0xd0] sm:$0xff]
    %v97 = vld [vmem:[#allocation6 + $0xd8] sm:$0xff]
    %v98 = vld [vmem:[#allocation6 + $0xe0] sm:$0xff]
    %v99 = vld [vmem:[#allocation6 + $0xe8] sm:$0xff]
    %v100 = vld [vmem:[#allocation6 + $0xf0] sm:$0xff]
    %v101 = vld [vmem:[#allocation6 + $0xf8] sm:$0xff]
    %v102 = vld [vmem:[#allocation6 + $0x100] sm:$0xff]
    %v103 = vld [vmem:[#allocation6 + $0x108] sm:$0xff]
    %v104 = vld [vmem:[#allocation6 + $0x110] sm:$0xff]
    %v105 = vld [vmem:[#allocation6 + $0x118] sm:$0xff]
    %v106 = vld [vmem:[#allocation6 + $0x120] sm:$0xff]
    %v107 = vld [vmem:[#allocation6 + $0x128] sm:$0xff]
    %v108 = vld [vmem:[#allocation6 + $0x130] sm:$0xff]
    %v109 = vld [vmem:[#allocation6 + $0x138] sm:$0xff]
    %v110 = vld [vmem:[#allocation6 + $0x140] sm:$0xff]
    %v111 = vld [vmem:[#allocation6 + $0x148] sm:$0xff]
    %v112 = vld [vmem:[#allocation6 + $0x150] sm:$0xff]
    %v113 = vld [vmem:[#allocation6 + $0x158] sm:$0xff]
    %v114 = vld [vmem:[#allocation6 + $0x160] sm:$0xff]
    %v115 = vld [vmem:[#allocation6 + $0x168] sm:$0xff]
    %v116 = vld [vmem:[#allocation6 + $0x170] sm:$0xff]
    %v117 = vld [vmem:[#allocation6 + $0x178] sm:$0xff]
    %v118 = vld [vmem:[#allocation6 + $0x180] sm:$0xff]
    %v119 = vld [vmem:[#allocation6 + $0x188] sm:$0xff]
    %v120 = vld [vmem:[#allocation6 + $0x190] sm:$0xff]
    %v121 = vld [vmem:[#allocation6 + $0x198] sm:$0xff]
    %v122 = vld [vmem:[#allocation6 + $0x1a0] sm:$0xff]
    %v123 = vld [vmem:[#allocation6 + $0x1a8] sm:$0xff]
    %v124 = vld [vmem:[#allocation6 + $0x1b0] sm:$0xff]
    %v125 = vld [vmem:[#allocation6 + $0x1b8] sm:$0xff]
    %v126 = vld [vmem:[#allocation6 + $0x1c0] sm:$0xff]
    %v127 = vld [vmem:[#allocation6 + $0x1c8] sm:$0xff]
    %v128 = vld [vmem:[#allocation6 + $0x1d0] sm:$0xff]
    %v129 = vld [vmem:[#allocation6 + $0x1d8] sm:$0xff]
    %v130 = vld [vmem:[#allocation6 + $0x1e0] sm:$0xff]
    %v131 = vld [vmem:[#allocation6 + $0x1e8] sm:$0xff]
    %v132 = vld [vmem:[#allocation6 + $0x1f0] sm:$0xff]
    %v133 = vld [vmem:[#allocation6 + $0x1f8] sm:$0xff]
    %v134 = vld [vmem:[#allocation6 + $0x200] sm:$0xff]
    %v135 = vld [vmem:[#allocation6 + $0x208] sm:$0xff]
    %v136 = vld [vmem:[#allocation6 + $0x210] sm:$0xff]
    %v137 = vld [vmem:[#allocation6 + $0x218] sm:$0xff]
    %v138 = vld [vmem:[#allocation6 + $0x220] sm:$0xff]
    %v139 = vld [vmem:[#allocation6 + $0x228] sm:$0xff]
    %v140 = vld [vmem:[#allocation6 + $0x230] sm:$0xff]
    %v141 = vld [vmem:[#allocation6 + $0x238] sm:$0xff]
    %v142 = vld [vmem:[#allocation6 + $0x240] sm:$0xff]
    %v143 = vld [vmem:[#allocation6 + $0x248] sm:$0xff]
    %v144 = vld [vmem:[#allocation6 + $0x250] sm:$0xff]
    %v145 = vld [vmem:[#allocation6 + $0x258] sm:$0xff]
    %v146 = vld [vmem:[#allocation6 + $0x260] sm:$0xff]
    %v147 = vld [vmem:[#allocation6 + $0x268] sm:$0xff]
    %v148 = vld [vmem:[#allocation6 + $0x270] sm:$0xff]
    %v149 = vld [vmem:[#allocation6 + $0x278] sm:$0xff]
    %v150 = vld [vmem:[#allocation6 + $0x280] sm:$0xff]
    %v151 = vld [vmem:[#allocation6 + $0x288] sm:$0xff]
    %v152 = vld [vmem:[#allocation6 + $0x290] sm:$0xff]
    %v153 = vld [vmem:[#allocation6 + $0x298] sm:$0xff]
    %v154 = vld [vmem:[#allocation6 + $0x2a0] sm:$0xff]
    %v155 = vld [vmem:[#allocation6 + $0x2a8] sm:$0xff]
    %v156 = vld [vmem:[#allocation6 + $0x2b0] sm:$0xff]
    %v157 = vld [vmem:[#allocation6 + $0x2b8] sm:$0xff]
    %v158 = vld [vmem:[#allocation6 + $0x2c0] sm:$0xff]
    %v159 = vld [vmem:[#allocation6 + $0x2c8] sm:$0xff]
    %v160 = vld [vmem:[#allocation6 + $0x2d0] sm:$0xff]
    %v161 = vld [vmem:[#allocation6 + $0x2d8] sm:$0xff]
    %v162 = vld [vmem:[#allocation6 + $0x2e0] sm:$0xff]
    %v163 = vld [vmem:[#allocation6 + $0x2e8] sm:$0xff]
    %v164 = vld [vmem:[#allocation6 + $0x2f0] sm:$0xff]
    %v165 = vld [vmem:[#allocation6 + $0x2f8] sm:$0xff]
    %v168 = vunpack.c.l.b16 %v68
    %v169 = vunpack.c.h.b16 %v68
    %v170 = vunpack.c.l.b16 %v69
    %v171 = vunpack.c.h.b16 %v69
    %v172 = vpack.c.b16 %v170, %v168
    %v173 = vpack.c.b16 %v171, %v169
    %v272 = vunpack.c.l.b16 %v70
    %v273 = vunpack.c.h.b16 %v70
    %v274 = vunpack.c.l.b16 %v71
    %v275 = vunpack.c.h.b16 %v71
    %v276 = vunpack.c.l.b16 %v72
    %v277 = vunpack.c.h.b16 %v72
    %v278 = vunpack.c.l.b16 %v73
    %v279 = vunpack.c.h.b16 %v73
    %v280 = vunpack.c.l.b16 %v74
    %v281 = vunpack.c.h.b16 %v74
    %v282 = vunpack.c.l.b16 %v75
    %v283 = vunpack.c.h.b16 %v75
    %v284 = vunpack.c.l.b16 %v76
    %v285 = vunpack.c.h.b16 %v76
    %v286 = vunpack.c.l.b16 %v77
    %v287 = vunpack.c.h.b16 %v77
    %v288 = vunpack.c.l.b16 %v78
    %v289 = vunpack.c.h.b16 %v78
    %v290 = vunpack.c.l.b16 %v79
    %v291 = vunpack.c.h.b16 %v79
    %v292 = vunpack.c.l.b16 %v80
    %v293 = vunpack.c.h.b16 %v80
    %v294 = vunpack.c.l.b16 %v81
    %v295 = vunpack.c.h.b16 %v81
    %v296 = vunpack.c.l.b16 %v82
    %v297 = vunpack.c.h.b16 %v82
    %v298 = vunpack.c.l.b16 %v83
    %v299 = vunpack.c.h.b16 %v83
    %v300 = vunpack.c.l.b16 %v84
    %v301 = vunpack.c.h.b16 %v84
    %v302 = vunpack.c.l.b16 %v85
    %v303 = vunpack.c.h.b16 %v85
    %v304 = vunpack.c.l.b16 %v86
    %v305 = vunpack.c.h.b16 %v86
    %v306 = vunpack.c.l.b16 %v87
    %v307 = vunpack.c.h.b16 %v87
    %v308 = vunpack.c.l.b16 %v88
    %v309 = vunpack.c.h.b16 %v88
    %v310 = vunpack.c.l.b16 %v89
    %v311 = vunpack.c.h.b16 %v89
    %v312 = vunpack.c.l.b16 %v90
    %v313 = vunpack.c.h.b16 %v90
    %v314 = vunpack.c.l.b16 %v91
    %v315 = vunpack.c.h.b16 %v91
    %v316 = vunpack.c.l.b16 %v92
    %v317 = vunpack.c.h.b16 %v92
    %v318 = vunpack.c.l.b16 %v93
    %v319 = vunpack.c.h.b16 %v93
    %v320 = vunpack.c.l.b16 %v94
    %v321 = vunpack.c.h.b16 %v94
    %v322 = vunpack.c.l.b16 %v95
    %v323 = vunpack.c.h.b16 %v95
    %v324 = vunpack.c.l.b16 %v96
    %v325 = vunpack.c.h.b16 %v96
    %v326 = vunpack.c.l.b16 %v97
    %v327 = vunpack.c.h.b16 %v97
    %v328 = vunpack.c.l.b16 %v98
    %v329 = vunpack.c.h.b16 %v98
    %v330 = vunpack.c.l.b16 %v99
    %v331 = vunpack.c.h.b16 %v99
    %v332 = vunpack.c.l.b16 %v100
    %v333 = vunpack.c.h.b16 %v100
    %v334 = vunpack.c.l.b16 %v101
    %v335 = vunpack.c.h.b16 %v101
    %v336 = vunpack.c.l.b16 %v102
    %v337 = vunpack.c.h.b16 %v102
    %v338 = vunpack.c.l.b16 %v103
    %v339 = vunpack.c.h.b16 %v103
    %v340 = vunpack.c.l.b16 %v104
    %v341 = vunpack.c.h.b16 %v104
    %v342 = vunpack.c.l.b16 %v105
    %v343 = vunpack.c.h.b16 %v105
    %v344 = vunpack.c.l.b16 %v106
    %v345 = vunpack.c.h.b16 %v106
    %v346 = vunpack.c.l.b16 %v107
    %v347 = vunpack.c.h.b16 %v107
    %v348 = vunpack.c.l.b16 %v108
    %v349 = vunpack.c.h.b16 %v108
    %v350 = vunpack.c.l.b16 %v109
    %v351 = vunpack.c.h.b16 %v109
    %v352 = vunpack.c.l.b16 %v110
    %v353 = vunpack.c.h.b16 %v110
    %v354 = vunpack.c.l.b16 %v111
    %v355 = vunpack.c.h.b16 %v111
    %v356 = vunpack.c.l.b16 %v112
    %v357 = vunpack.c.h.b16 %v112
    %v358 = vunpack.c.l.b16 %v113
    %v359 = vunpack.c.h.b16 %v113
    %v360 = vunpack.c.l.b16 %v114
    %v361 = vunpack.c.h.b16 %v114
    %v362 = vunpack.c.l.b16 %v115
    %v363 = vunpack.c.h.b16 %v115
    %v364 = vunpack.c.l.b16 %v116
    %v365 = vunpack.c.h.b16 %v116
    %v366 = vunpack.c.l.b16 %v117
    %v367 = vunpack.c.h.b16 %v117
    %v368 = vunpack.c.l.b16 %v118
    %v369 = vunpack.c.h.b16 %v118
    %v370 = vunpack.c.l.b16 %v119
    %v371 = vunpack.c.h.b16 %v119
    %v372 = vunpack.c.l.b16 %v120
    %v373 = vunpack.c.h.b16 %v120
    %v374 = vunpack.c.l.b16 %v121
    %v375 = vunpack.c.h.b16 %v121
    %v376 = vunpack.c.l.b16 %v122
    %v377 = vunpack.c.h.b16 %v122
    %v378 = vunpack.c.l.b16 %v123
    %v379 = vunpack.c.h.b16 %v123
    %v380 = vunpack.c.l.b16 %v124
    %v381 = vunpack.c.h.b16 %v124
    %v382 = vunpack.c.l.b16 %v125
    %v383 = vunpack.c.h.b16 %v125
    %v384 = vunpack.c.l.b16 %v126
    %v385 = vunpack.c.h.b16 %v126
    %v386 = vunpack.c.l.b16 %v127
    %v387 = vunpack.c.h.b16 %v127
    %v388 = vunpack.c.l.b16 %v128
    %v389 = vunpack.c.h.b16 %v128
    %v390 = vunpack.c.l.b16 %v129
    %v391 = vunpack.c.h.b16 %v129
    %v392 = vunpack.c.l.b16 %v130
    %v393 = vunpack.c.h.b16 %v130
    %v394 = vunpack.c.l.b16 %v131
    %v395 = vunpack.c.h.b16 %v131
    %v396 = vunpack.c.l.b16 %v132
    %v397 = vunpack.c.h.b16 %v132
    %v398 = vunpack.c.l.b16 %v133
    %v399 = vunpack.c.h.b16 %v133
    %v400 = vunpack.c.l.b16 %v134
    %v401 = vunpack.c.h.b16 %v134
    %v402 = vunpack.c.l.b16 %v135
    %v403 = vunpack.c.h.b16 %v135
    %v404 = vunpack.c.l.b16 %v136
    %v405 = vunpack.c.h.b16 %v136
    %v406 = vunpack.c.l.b16 %v137
    %v407 = vunpack.c.h.b16 %v137
    %v408 = vunpack.c.l.b16 %v138
    %v409 = vunpack.c.h.b16 %v138
    %v410 = vunpack.c.l.b16 %v139
    %v411 = vunpack.c.h.b16 %v139
    %v412 = vunpack.c.l.b16 %v140
    %v413 = vunpack.c.h.b16 %v140
    %v414 = vunpack.c.l.b16 %v141
    %v415 = vunpack.c.h.b16 %v141
    %v416 = vunpack.c.l.b16 %v142
    %v417 = vunpack.c.h.b16 %v142
    %v418 = vunpack.c.l.b16 %v143
    %v419 = vunpack.c.h.b16 %v143
    %v420 = vunpack.c.l.b16 %v144
    %v421 = vunpack.c.h.b16 %v144
    %v422 = vunpack.c.l.b16 %v145
    %v423 = vunpack.c.h.b16 %v145
    %v424 = vunpack.c.l.b16 %v146
    %v425 = vunpack.c.h.b16 %v146
    %v426 = vunpack.c.l.b16 %v147
    %v427 = vunpack.c.h.b16 %v147
    %v428 = vunpack.c.l.b16 %v148
    %v429 = vunpack.c.h.b16 %v148
    %v430 = vunpack.c.l.b16 %v149
    %v431 = vunpack.c.h.b16 %v149
    %v432 = vunpack.c.l.b16 %v150
    %v433 = vunpack.c.h.b16 %v150
    %v434 = vunpack.c.l.b16 %v151
    %v435 = vunpack.c.h.b16 %v151
    %v436 = vunpack.c.l.b16 %v152
    %v437 = vunpack.c.h.b16 %v152
    %v438 = vunpack.c.l.b16 %v153
    %v439 = vunpack.c.h.b16 %v153
    %v440 = vunpack.c.l.b16 %v154
    %v441 = vunpack.c.h.b16 %v154
    %v442 = vunpack.c.l.b16 %v155
    %v443 = vunpack.c.h.b16 %v155
    %v444 = vunpack.c.l.b16 %v156
    %v445 = vunpack.c.h.b16 %v156
    %v446 = vunpack.c.l.b16 %v157
    %v447 = vunpack.c.h.b16 %v157
    %v448 = vunpack.c.l.b16 %v158
    %v449 = vunpack.c.h.b16 %v158
    %v450 = vunpack.c.l.b16 %v159
    %v451 = vunpack.c.h.b16 %v159
    %v452 = vunpack.c.l.b16 %v160
    %v453 = vunpack.c.h.b16 %v160
    %v454 = vunpack.c.l.b16 %v161
    %v455 = vunpack.c.h.b16 %v161
    %v456 = vunpack.c.l.b16 %v162
    %v457 = vunpack.c.h.b16 %v162
    %v458 = vunpack.c.l.b16 %v163
    %v459 = vunpack.c.h.b16 %v163
    %v460 = vunpack.c.l.b16 %v164
    %v461 = vunpack.c.h.b16 %v164
    %v462 = vunpack.c.l.b16 %v165
    %v463 = vunpack.c.h.b16 %v165
    %v464 = vpack.c.b16 %v278, %v272
    %v465 = vpack.c.b16 %v279, %v273
    %v466 = vpack.c.b16 %v280, %v274
    %v467 = vpack.c.b16 %v281, %v275
    %v468 = vpack.c.b16 %v282, %v276
    %v469 = vpack.c.b16 %v283, %v277
    %v470 = vpack.c.b16 %v290, %v284
    %v471 = vpack.c.b16 %v291, %v285
    %v472 = vpack.c.b16 %v292, %v286
    %v473 = vpack.c.b16 %v293, %v287
    %v474 = vpack.c.b16 %v294, %v288
    %v475 = vpack.c.b16 %v295, %v289
    %v476 = vpack.c.b16 %v302, %v296
    %v477 = vpack.c.b16 %v303, %v297
    %v478 = vpack.c.b16 %v304, %v298
    %v479 = vpack.c.b16 %v305, %v299
    %v480 = vpack.c.b16 %v306, %v300
    %v481 = vpack.c.b16 %v307, %v301
    %v482 = vpack.c.b16 %v314, %v308
    %v483 = vpack.c.b16 %v315, %v309
    %v484 = vpack.c.b16 %v316, %v310
    %v485 = vpack.c.b16 %v317, %v311
    %v486 = vpack.c.b16 %v318, %v312
    %v487 = vpack.c.b16 %v319, %v313
    %v488 = vpack.c.b16 %v326, %v320
    %v489 = vpack.c.b16 %v327, %v321
    %v490 = vpack.c.b16 %v328, %v322
    %v491 = vpack.c.b16 %v329, %v323
    %v492 = vpack.c.b16 %v330, %v324
    %v493 = vpack.c.b16 %v331, %v325
    %v494 = vpack.c.b16 %v338, %v332
    %v495 = vpack.c.b16 %v339, %v333
    %v496 = vpack.c.b16 %v340, %v334
    %v497 = vpack.c.b16 %v341, %v335
    %v498 = vpack.c.b16 %v342, %v336
    %v499 = vpack.c.b16 %v343, %v337
    %v500 = vpack.c.b16 %v350, %v344
    %v501 = vpack.c.b16 %v351, %v345
    %v502 = vpack.c.b16 %v352, %v346
    %v503 = vpack.c.b16 %v353, %v347
    %v504 = vpack.c.b16 %v354, %v348
    %v505 = vpack.c.b16 %v355, %v349
    %v506 = vpack.c.b16 %v362, %v356
    %v507 = vpack.c.b16 %v363, %v357
    %v508 = vpack.c.b16 %v364, %v358
    %v509 = vpack.c.b16 %v365, %v359
    %v510 = vpack.c.b16 %v366, %v360
    %v511 = vpack.c.b16 %v367, %v361
    %v512 = vpack.c.b16 %v374, %v368
    %v513 = vpack.c.b16 %v375, %v369
    %v514 = vpack.c.b16 %v376, %v370
    %v515 = vpack.c.b16 %v377, %v371
    %v516 = vpack.c.b16 %v378, %v372
    %v517 = vpack.c.b16 %v379, %v373
    %v518 = vpack.c.b16 %v386, %v380
    %v519 = vpack.c.b16 %v387, %v381
    %v520 = vpack.c.b16 %v388, %v382
    %v521 = vpack.c.b16 %v389, %v383
    %v522 = vpack.c.b16 %v390, %v384
    %v523 = vpack.c.b16 %v391, %v385
    %v524 = vpack.c.b16 %v398, %v392
    %v525 = vpack.c.b16 %v399, %v393
    %v526 = vpack.c.b16 %v400, %v394
    %v527 = vpack.c.b16 %v401, %v395
    %v528 = vpack.c.b16 %v402, %v396
    %v529 = vpack.c.b16 %v403, %v397
    %v530 = vpack.c.b16 %v410, %v404
    %v531 = vpack.c.b16 %v411, %v405
    %v532 = vpack.c.b16 %v412, %v406
    %v533 = vpack.c.b16 %v413, %v407
    %v534 = vpack.c.b16 %v414, %v408
    %v535 = vpack.c.b16 %v415, %v409
    %v536 = vpack.c.b16 %v422, %v416
    %v537 = vpack.c.b16 %v423, %v417
    %v538 = vpack.c.b16 %v424, %v418
    %v539 = vpack.c.b16 %v425, %v419
    %v540 = vpack.c.b16 %v426, %v420
    %v541 = vpack.c.b16 %v427, %v421
    %v542 = vpack.c.b16 %v434, %v428
    %v543 = vpack.c.b16 %v435, %v429
    %v544 = vpack.c.b16 %v436, %v430
    %v545 = vpack.c.b16 %v437, %v431
    %v546 = vpack.c.b16 %v438, %v432
    %v547 = vpack.c.b16 %v439, %v433
    %v548 = vpack.c.b16 %v446, %v440
    %v549 = vpack.c.b16 %v447, %v441
    %v550 = vpack.c.b16 %v448, %v442
    %v551 = vpack.c.b16 %v449, %v443
    %v552 = vpack.c.b16 %v450, %v444
    %v553 = vpack.c.b16 %v451, %v445
    %v554 = vpack.c.b16 %v458, %v452
    %v555 = vpack.c.b16 %v459, %v453
    %v556 = vpack.c.b16 %v460, %v454
    %v557 = vpack.c.b16 %v461, %v455
    %v558 = vpack.c.b16 %v462, %v456
    %v559 = vpack.c.b16 %v463, %v457
    %656 = vmatprep.subr.bf16.mxu0 %v465
    %657 = vmatpush1.bf16.msra.mxu0 %v464
    %658 = vmatprep.subr.bf16.mxu0 %v471
    %659 = vmatpush1.bf16.msra.mxu0 %v470
    %660 = vmatprep.subr.bf16.mxu0 %v477
    %661 = vmatpush1.bf16.msra.mxu0 %v476
    %662 = vmatprep.subr.bf16.mxu0 %v483
    %663 = vmatpush1.bf16.msra.mxu0 %v482
    %664 = vmatprep.subr.bf16.mxu0 %v489
    %665 = vmatpush1.bf16.msra.mxu0 %v488
    %666 = vmatprep.subr.bf16.mxu0 %v495
    %667 = vmatpush1.bf16.msra.mxu0 %v494
    %668 = vmatprep.subr.bf16.mxu0 %v501
    %669 = vmatpush1.bf16.msra.mxu0 %v500
    %670 = vmatprep.subr.bf16.mxu0 %v507
    %671 = vmatpush1.bf16.msra.mxu0 %v506
    %672 = vmatprep.subr.bf16.mxu0 %v513
    %673 = vmatpush1.bf16.msra.mxu0 %v512
    %674 = vmatprep.subr.bf16.mxu0 %v519
    %675 = vmatpush1.bf16.msra.mxu0 %v518
    %676 = vmatprep.subr.bf16.mxu0 %v525
    %677 = vmatpush1.bf16.msra.mxu0 %v524
    %678 = vmatprep.subr.bf16.mxu0 %v531
    %679 = vmatpush1.bf16.msra.mxu0 %v530
    %680 = vmatprep.subr.bf16.mxu0 %v537
    %681 = vmatpush1.bf16.msra.mxu0 %v536
    %682 = vmatprep.subr.bf16.mxu0 %v543
    %683 = vmatpush1.bf16.msra.mxu0 %v542
    %684 = vmatprep.subr.bf16.mxu0 %v549
    %685 = vmatpush1.bf16.msra.mxu0 %v548
    %686 = vmatprep.subr.bf16.mxu0 %v555
    %687 = vmatpush1.bf16.msra.mxu0 %v554
    %688 = vmatprep.mubr.bf16.mxu0 %v173
    %689 = vmatmul.mubr.bf16.gmra.mrb[0].mxu0 %v172
    %v690 = vpop.f32.mrb[0].mxu0
    %v691 = vadd.f32 0.0, %v690
    %v692 = vpop.f32.mrb[0].mxu0
    %v693 = vadd.f32 0.0, %v692
    %v694 = vpop.f32.mrb[0].mxu0
    %v695 = vadd.f32 0.0, %v694
    %v696 = vpop.f32.mrb[0].mxu0
    %v697 = vadd.f32 0.0, %v696
    %698 = vdwg.mxu0
    %699 = vmatprep.subr.bf16.mxu0 %v467
    %700 = vmatpush1.bf16.msra.mxu0 %v466
    %701 = vmatprep.subr.bf16.mxu0 %v473
    %702 = vmatpush1.bf16.msra.mxu0 %v472
    %703 = vmatprep.subr.bf16.mxu0 %v479
    %704 = vmatpush1.bf16.msra.mxu0 %v478
    %705 = vmatprep.subr.bf16.mxu0 %v485
    %706 = vmatpush1.bf16.msra.mxu0 %v484
    %707 = vmatprep.subr.bf16.mxu0 %v491
    %708 = vmatpush1.bf16.msra.mxu0 %v490
    %709 = vmatprep.subr.bf16.mxu0 %v497
    %710 = vmatpush1.bf16.msra.mxu0 %v496
    %711 = vmatprep.subr.bf16.mxu0 %v503
    %712 = vmatpush1.bf16.msra.mxu0 %v502
    %713 = vmatprep.subr.bf16.mxu0 %v509
    %714 = vmatpush1.bf16.msra.mxu0 %v508
    %715 = vmatprep.subr.bf16.mxu0 %v515
    %716 = vmatpush1.bf16.msra.mxu0 %v514
    %717 = vmatprep.subr.bf16.mxu0 %v521
    %718 = vmatpush1.bf16.msra.mxu0 %v520
    %719 = vmatprep.subr.bf16.mxu0 %v527
    %720 = vmatpush1.bf16.msra.mxu0 %v526
    %721 = vmatprep.subr.bf16.mxu0 %v533
    %722 = vmatpush1.bf16.msra.mxu0 %v532
    %723 = vmatprep.subr.bf16.mxu0 %v539
    %724 = vmatpush1.bf16.msra.mxu0 %v538
    %725 = vmatprep.subr.bf16.mxu0 %v545
    %726 = vmatpush1.bf16.msra.mxu0 %v544
    %727 = vmatprep.subr.bf16.mxu0 %v551
    %728 = vmatpush1.bf16.msra.mxu0 %v550
    %729 = vmatprep.subr.bf16.mxu0 %v557
    %730 = vmatpush1.bf16.msra.mxu0 %v556
    %731 = vmatprep.mubr.bf16.mxu0 %v173
    %732 = vmatmul.mubr.bf16.gmra.mrb[0].mxu0 %v172
    %v733 = vpop.f32.mrb[0].mxu0
    %v734 = vadd.f32 0.0, %v733
    %v735 = vpop.f32.mrb[0].mxu0
    %v736 = vadd.f32 0.0, %v735
    %v737 = vpop.f32.mrb[0].mxu0
    %v738 = vadd.f32 0.0, %v737
    %v739 = vpop.f32.mrb[0].mxu0
    %v740 = vadd.f32 0.0, %v739
    %741 = vdwg.mxu0
    %742 = vmatprep.subr.bf16.mxu0 %v469
    %743 = vmatpush1.bf16.msra.mxu0 %v468
    %744 = vmatprep.subr.bf16.mxu0 %v475
    %745 = vmatpush1.bf16.msra.mxu0 %v474
    %746 = vmatprep.subr.bf16.mxu0 %v481
    %747 = vmatpush1.bf16.msra.mxu0 %v480
    %748 = vmatprep.subr.bf16.mxu0 %v487
    %749 = vmatpush1.bf16.msra.mxu0 %v486
    %750 = vmatprep.subr.bf16.mxu0 %v493
    %751 = vmatpush1.bf16.msra.mxu0 %v492
    %752 = vmatprep.subr.bf16.mxu0 %v499
    %753 = vmatpush1.bf16.msra.mxu0 %v498
    %754 = vmatprep.subr.bf16.mxu0 %v505
    %755 = vmatpush1.bf16.msra.mxu0 %v504
    %756 = vmatprep.subr.bf16.mxu0 %v511
    %757 = vmatpush1.bf16.msra.mxu0 %v510
    %758 = vmatprep.subr.bf16.mxu0 %v517
    %759 = vmatpush1.bf16.msra.mxu0 %v516
    %760 = vmatprep.subr.bf16.mxu0 %v523
    %761 = vmatpush1.bf16.msra.mxu0 %v522
    %762 = vmatprep.subr.bf16.mxu0 %v529
    %763 = vmatpush1.bf16.msra.mxu0 %v528
    %764 = vmatprep.subr.bf16.mxu0 %v535
    %765 = vmatpush1.bf16.msra.mxu0 %v534
    %766 = vmatprep.subr.bf16.mxu0 %v541
    %767 = vmatpush1.bf16.msra.mxu0 %v540
    %768 = vmatprep.subr.bf16.mxu0 %v547
    %769 = vmatpush1.bf16.msra.mxu0 %v546
    %770 = vmatprep.subr.bf16.mxu0 %v553
    %771 = vmatpush1.bf16.msra.mxu0 %v552
    %772 = vmatprep.subr.bf16.mxu0 %v559
    %773 = vmatpush1.bf16.msra.mxu0 %v558
    %774 = vmatprep.mubr.bf16.mxu0 %v173
    %775 = vmatmul.mubr.bf16.gmra.mrb[0].mxu0 %v172
    %v776 = vpop.f32.mrb[0].mxu0
    %v777 = vadd.f32 0.0, %v776
    %v778 = vpop.f32.mrb[0].mxu0
    %v779 = vadd.f32 0.0, %v778
    %v780 = vpop.f32.mrb[0].mxu0
    %v781 = vadd.f32 0.0, %v780
    %v782 = vpop.f32.mrb[0].mxu0
    %v783 = vadd.f32 0.0, %v782
    %784 = vdwg.mxu0
    %v785 = vadd.f32 %v56, %v691
    %v786 = vadd.f32 %v57, %v693
    %v787 = vadd.f32 %v58, %v734
    %v788 = vadd.f32 %v59, %v736
    %v789 = vadd.f32 %v60, %v777
    %v790 = vadd.f32 %v61, %v779
    %v791 = vadd.f32 %v62, %v695
    %v792 = vadd.f32 %v63, %v697
    %v793 = vadd.f32 %v64, %v738
    %v794 = vadd.f32 %v65, %v740
    %v795 = vadd.f32 %v66, %v781
    %v796 = vadd.f32 %v67, %v783
    %797 = vst [vmem:[#allocation2] sm:$0xff] %v785
    %798 = vst [vmem:[#allocation2 + $0x8] sm:$0xff] %v786
    %799 = vst [vmem:[#allocation2 + $0x10] sm:$0xff] %v787
    %800 = vst [vmem:[#allocation2 + $0x18] sm:$0xff] %v788
    %801 = vst [vmem:[#allocation2 + $0x20] sm:$0xff] %v789
    %802 = vst [vmem:[#allocation2 + $0x28] sm:$0xff] %v790
    %803 = vst [vmem:[#allocation2 + $0x30] sm:$0xff] %v791
    %804 = vst [vmem:[#allocation2 + $0x38] sm:$0xff] %v792
    %805 = vst [vmem:[#allocation2 + $0x40] sm:$0xff] %v793
    %806 = vst [vmem:[#allocation2 + $0x48] sm:$0xff] %v794
    %807 = vst [vmem:[#allocation2 + $0x50] sm:$0xff] %v795
    %808 = vst [vmem:[#allocation2 + $0x58] sm:$0xff] %v796
    // Predicated region
    $region22: #{tpu_custom_call.1} parent=1 // pred_check
      %p809 = pneg %p40
    $region23: #{tpu_custom_call.1} parent=1 // pred_check_branch
      %811 = sbr.rel (%p809) target = $region25
    $region24: #{tpu_custom_call.1} parent=1 // pred_region
      %v812 = vld [vmem:[#allocation2] sm:$0xff]
      %v813 = vld [vmem:[#allocation2 + $0x8] sm:$0xff]
      %v814 = vld [vmem:[#allocation2 + $0x10] sm:$0xff]
      %v815 = vld [vmem:[#allocation2 + $0x18] sm:$0xff]
      %v816 = vld [vmem:[#allocation2 + $0x20] sm:$0xff]
      %v817 = vld [vmem:[#allocation2 + $0x28] sm:$0xff]
      %v818 = vld [vmem:[#allocation2 + $0x30] sm:$0xff]
      %v819 = vld [vmem:[#allocation2 + $0x38] sm:$0xff]
      %v820 = vld [vmem:[#allocation2 + $0x40] sm:$0xff]
      %v821 = vld [vmem:[#allocation2 + $0x48] sm:$0xff]
      %v822 = vld [vmem:[#allocation2 + $0x50] sm:$0xff]
      %v823 = vld [vmem:[#allocation2 + $0x58] sm:$0xff]
      %v824 = vpack.c.bf16 %v818, %v812
      %v825 = vpack.c.bf16 %v819, %v813
      %v826 = vpack.c.bf16 %v820, %v814
      %v827 = vpack.c.bf16 %v821, %v815
      %v828 = vpack.c.bf16 %v822, %v816
      %v829 = vpack.c.bf16 %v823, %v817
      %v836 = vunpack.c.l.b16 %v824
      %v837 = vunpack.c.l.b16 %v825
      %v838 = vunpack.c.l.b16 %v826
      %v839 = vunpack.c.l.b16 %v827
      %v840 = vunpack.c.l.b16 %v828
      %v841 = vunpack.c.l.b16 %v829
      %v842 = vunpack.c.h.b16 %v824
      %v843 = vunpack.c.h.b16 %v825
      %v844 = vunpack.c.h.b16 %v826
      %v845 = vunpack.c.h.b16 %v827
      %v846 = vunpack.c.h.b16 %v828
      %v847 = vunpack.c.h.b16 %v829
      %v848 = vpack.c.b16 %v837, %v836
      %v849 = vpack.c.b16 %v839, %v838
      %v850 = vpack.c.b16 %v841, %v840
      %v851 = vpack.c.b16 %v843, %v842
      %v852 = vpack.c.b16 %v845, %v844
      %v853 = vpack.c.b16 %v847, %v846
      %860 = vst [vmem:[#allocation8] sm:$0xff] %v848
      %861 = vst [vmem:[#allocation8 + $0x8] sm:$0xff] %v849
      %862 = vst [vmem:[#allocation8 + $0x10] sm:$0xff] %v850
      %863 = vst [vmem:[#allocation8 + $0x18] sm:$0xff] %v851
      %864 = vst [vmem:[#allocation8 + $0x20] sm:$0xff] %v852
      %865 = vst [vmem:[#allocation8 + $0x28] sm:$0xff] %v853
    $region25: #{tpu_custom_call.1} parent=1 // pred_fallthru
      _
    // Predicated region
    $region26: #{tpu_custom_call.1} parent=1 // pred_check
      _
    $region27: #{tpu_custom_call.1} parent=1 // pred_check_branch
      %867 = sbr.rel (0) target = $region29
    $region28: #{tpu_custom_call.1} parent=1 // pred_region
      %s869 = ssub.s32 768, 768
      %870 = vsyncadd [#allocation5], %s869
      %s871 = sshll.u32 [#allocation8], 4
      %s872 = int_to_ptr.vmem [resolvable:$true] %s871
      %877 = dma.vmem_to_hbm [thread:$0]  %s872, 768, %s2, [#allocation5], 384, 384, 24
    $region29: #{tpu_custom_call.1} parent=1 // pred_fallthru
      _
    // Predicated region
    $region30: #{tpu_custom_call.1} parent=1 // pred_check
      _
    $region31: #{tpu_custom_call.1} parent=1 // pred_check_branch
      %879 = sbr.rel (0) target = $region33
    $region32: #{tpu_custom_call.1} parent=1 // pred_region
      %880 = dma.done [#allocation5], 768
    $region33: #{tpu_custom_call.1} parent=1 // pred_fallthru
      _
    %881 = vsyncpa [#allocation4], 1
    %882 = vsyncpa [#allocation7], 1
    %883 = vsyncpa [#allocation5], 1

</llo_original>
